<compile_context>
chip_gen: v6e
topology: v6e:2x2x1
jax: 0.10.0
libtpu: 0.0.40
codegen_flags: <defaults>
</compile_context>

<pallas_src>
import functools
import math

import jax
import jax.numpy as jnp
from jax.experimental import pallas as pl
from jax.experimental.pallas import tpu as pltpu


# ----------------------------------------------------------------------------
# Fused per-crop kernel: one grid step == one (bc-tile, hw-chunk)
# ----------------------------------------------------------------------------
def _crop_fused_kernel(x_ref, sel_ref, wbr_ref, bb_ref, wh_ref, bh_ref,
                       o_ref, acc_ref, *, inv_hw):
    # x_ref  : (TBC, THW)  lane-dense slab of the crop (row = sample*C + channel)
    # sel_ref: (TB, TBC)   one-hot unflatten matrix (row t selects sample t's channels)
    # wbr_ref: (TBC, HID)  backbone weight with rows replicated per sample (wb[r % C])
    # bb_ref : (1, HID)    backbone bias
    # wh_ref : (HID, OUTP) head weight, lane-padded
    # bh_ref : (1, OUTP)   head bias,   lane-padded
    # o_ref  : (TB, OUTP)  output rows for this bc tile
    # acc_ref: (TBC, 1)    running per-row spatial sum (VMEM scratch)
    k = pl.program_id(1)

    @pl.when(k == 0)
    def _init():
        acc_ref[...] = jnp.zeros_like(acc_ref)

    # Partial global-average-pool: per-row sum over this H*W chunk (f32 accumulation).
    acc_ref[...] += jnp.sum(x_ref[...].astype(jnp.float32), axis=-1, keepdims=True)

    @pl.when(k == pl.num_programs(1) - 1)
    def _finalize():
        mean_rows = acc_ref[...] * inv_hw                       # (TBC, 1) exact mean
        # pooled(B, C) @ W_backbone without an in-kernel reshape:
        #   feat[t, h] = sum_c mean[t*C + c] * wb[c, h]
        chan = mean_rows * wbr_ref[...]                         # (TBC, HID)
        feat = jnp.dot(sel_ref[...], chan,
                       preferred_element_type=jnp.float32) + bb_ref[...]
        out = jnp.dot(feat, wh_ref[...],
                      preferred_element_type=jnp.float32) + bh_ref[...]   # fused head
        o_ref[...] = out.astype(o_ref.dtype)


# ----------------------------------------------------------------------------
# Tile selection helpers (trace-time, static)
# ----------------------------------------------------------------------------
def _choose_bc_tile(bc, c, cap=512):
    """Rows per tile: multiple of C (whole samples) and of 8 (full sublanes),
    divides B*C. Falls back to the whole axis for small problems."""
    if bc <= cap:
        return bc
    step = (8 * c) // math.gcd(8, c)          # lcm(8, C)
    best, t = None, step
    while t <= cap:
        if bc % t == 0:
            best = t
        t += step
    return best if best is not None else bc


def _choose_hw_tile(hw, tbc, elem_bytes, target_bytes=4 << 20):
    """H*W chunk: multiple of 128 (or the full axis), divides H*W,
    keeps the x block under ~target_bytes."""
    if hw % 128 != 0:
        return hw
    max_elems = max(128, target_bytes // max(1, tbc * elem_bytes))
    if hw <= max_elems:
        return hw
    best, d = 128, 128
    while d <= max_elems:
        if hw % d == 0:
            best = d
        d += 128
    return best


def _pad_last_to(a, mult):
    pad = (-a.shape[-1]) % mult
    if pad == 0:
        return a
    cfg = [(0, 0)] * (a.ndim - 1) + [(0, pad)]
    return jnp.pad(a, cfg)


# ----------------------------------------------------------------------------
# One fused pallas_call per crop (true H*W is static, zero data repacking)
# ----------------------------------------------------------------------------
def _crop_forward(x2d, wb, bb, wh_p, bh_p, *, c, hw):
    bc = int(x2d.shape[0])
    hid, out_p = int(wh_p.shape[0]), int(wh_p.shape[1])

    tbc = _choose_bc_tile(bc, c)
    tb = tbc // c
    thw = _choose_hw_tile(hw, tbc, x2d.dtype.itemsize)
    n_bc, n_hw = bc // tbc, hw // thw

    # One-hot "unflatten" matrix and per-row-replicated backbone weights; shared by
    # every bc tile (the tile-internal row layout is identical across tiles).
    sel = (jnp.arange(tbc, dtype=jnp.int32)[None, :] // c
           == jnp.arange(tb, dtype=jnp.int32)[:, None]).astype(jnp.float32)
    wbr = jnp.tile(wb, (tb, 1))                                  # (TBC, HID)

    # Explicit scoped-VMEM budget with headroom (portable across v5e/v6e/v7x).
    est = 4 * (2 * tbc * thw
               + 2 * (tbc * hid + tb * tbc + hid * out_p + hid + out_p + tb * out_p)
               + tbc * 128)
    vmem_limit = int(min(max(2 * est, 16 << 20), 64 << 20))

    grid_spec = pltpu.PrefetchScalarGridSpec(
        num_scalar_prefetch=0,
        grid=(n_bc, n_hw),
        in_specs=[
            pl.BlockSpec((tbc, thw), lambda i, k: (i, k)),
            pl.BlockSpec((tb, tbc), lambda i, k: (0, 0)),
            pl.BlockSpec((tbc, hid), lambda i, k: (0, 0)),
            pl.BlockSpec((1, hid), lambda i, k: (0, 0)),
            pl.BlockSpec((hid, out_p), lambda i, k: (0, 0)),
            pl.BlockSpec((1, out_p), lambda i, k: (0, 0)),
        ],
        out_specs=pl.BlockSpec((tb, out_p), lambda i, k: (i, 0)),
        scratch_shapes=[pltpu.VMEM((tbc, 1), jnp.float32)],
    )

    kernel = functools.partial(_crop_fused_kernel, inv_hw=float(1.0 / hw))
    return pl.pallas_call(
        kernel,
        out_shape=jax.ShapeDtypeStruct((bc // c, out_p), jnp.float32),
        grid_spec=grid_spec,
        compiler_params=pltpu.CompilerParams(
            dimension_semantics=("parallel", "arbitrary"),
            vmem_limit_bytes=vmem_limit,
        ),
    )(x2d, sel, wbr, bb, wh_p, bh_p)


# ----------------------------------------------------------------------------
# MultiCropWrapper forward
# ----------------------------------------------------------------------------
def multi_crop_wrapper_forward(x, params):
    """x: a single (N, C, H, W) array or a list of them (crops of varying res)."""
    if not isinstance(x, (list, tuple)):
        x = [x]
    x = list(x)

    # Faithful MultiCropWrapper grouping: cumsum(unique_consecutive(widths)).
    # Kept for fidelity/validation; since the synthetic backbone (GAP + Linear) is
    # per-sample, per-crop fused kernels yield the same concatenated rows as the
    # per-group batched forwards.
    widths = [int(inp.shape[-1]) for inp in x]
    idx_crops, prev = [], None
    for j, w_ in enumerate(widths):
        if prev is not None and w_ == prev:
            idx_crops[-1] = j + 1
        else:
            idx_crops.append(j + 1)
        prev = w_
    start = 0
    for end in idx_crops:
        shapes = {inp.shape[1:] for inp in x[start:end]}
        assert len(shapes) == 1, "crops grouped by width must share (C, H, W)"
        start = end

    B, C = int(x[0].shape[0]), int(x[0].shape[1])
    assert all(int(inp.shape[0]) == B and int(inp.shape[1]) == C for inp in x)
    # TODO(synk): support ragged per-crop batch sizes (needs per-crop row offsets).

    wb = params["w_backbone"]                     # (C, HID)
    bb = params["b_backbone"].reshape(1, -1)      # (1, HID)
    wh = params["w_head"]                         # (HID, OUT)
    bh = params["b_head"].reshape(1, -1)          # (1, OUT)
    OUT = int(wh.shape[1])
    wh_p = _pad_last_to(wh, 128)                  # lane-dense head output
    bh_p = _pad_last_to(bh, 128)

    outs = []
    for inp in x:
        hw = int(inp.shape[2]) * int(inp.shape[3])
        x2d = inp.reshape(B * C, hw)              # free reshape: lane-dense slab
        outs.append(_crop_forward(x2d, wb, bb, wh_p, bh_p, c=C, hw=hw))

    out = jnp.concatenate(outs, axis=0)           # rows already in list order
    return out[:, :OUT] if out.shape[1] != OUT else out


# ----------------------------------------------------------------------------
# Main
# ----------------------------------------------------------------------------
if __name__ == "__main__":
    key = jax.random.PRNGKey(0)
    k_in1, k_in2, k_in3, k_wb, k_bb, k_wh, k_bh = jax.random.split(key, 7)

    B, C = 2, 4
    HID, OUT = 32, 16

    # Two "global" crops at 16x16 followed by one "local" crop at 8x8.
    x_g1 = jax.random.normal(k_in1, (B, C, 16, 16), dtype=jnp.float32)
    x_g2 = jax.random.normal(k_in2, (B, C, 16, 16), dtype=jnp.float32)
    x_l1 = jax.random.normal(k_in3, (B, C, 8, 8), dtype=jnp.float32)
    crops = [x_g1, x_g2, x_l1]

    params = {
        "w_backbone": 0.05 * jax.random.normal(k_wb, (C, HID), dtype=jnp.float32),
        "b_backbone": 0.01 * jax.random.normal(k_bb, (HID,), dtype=jnp.float32),
        "w_head": 0.05 * jax.random.normal(k_wh, (HID, OUT), dtype=jnp.float32),
        "b_head": 0.01 * jax.random.normal(k_bh, (OUT,), dtype=jnp.float32),
    }

    out = multi_crop_wrapper_forward(crops, params)
    out = jax.block_until_ready(out)

    # Plain-JAX reference with the exact MultiCropWrapper grouping semantics.
    def ref_backbone(xb):
        return jnp.mean(xb, axis=(2, 3)) @ params["w_backbone"] + params["b_backbone"]

    ref_feats = jnp.concatenate(
        [ref_backbone(jnp.concatenate([x_g1, x_g2], axis=0)), ref_backbone(x_l1)],
        axis=0,
    )
    ref_out = ref_feats @ params["w_head"] + params["b_head"]

    assert out.shape == (3 * B, OUT), out.shape
    assert jnp.allclose(out, ref_out, atol=1e-4, rtol=1e-4), float(
        jnp.max(jnp.abs(out - ref_out))
    )

    print("KERNEL_OK")
</pallas_src>

<mosaic_0001>
module attributes {stable_mosaic.version = 11 : i64} {
  func.func @_crop_fused_kernel(%arg0: i32, %arg1: i32, %arg2: memref<8x256xf32, #tpu.memory_space<vmem>>, %arg3: memref<2x8xf32, #tpu.memory_space<vmem>>, %arg4: memref<8x32xf32, #tpu.memory_space<vmem>>, %arg5: memref<1x32xf32, #tpu.memory_space<vmem>>, %arg6: memref<32x128xf32, #tpu.memory_space<vmem>>, %arg7: memref<1x128xf32, #tpu.memory_space<vmem>>, %arg8: memref<2x128xf32, #tpu.memory_space<vmem>>, %arg9: memref<8x1xf32, #tpu.memory_space<vmem>>) attributes {dimension_semantics = [#tpu.dimension_semantics<parallel>, #tpu.dimension_semantics<arbitrary>], iteration_bounds = array<i64: 1, 1>, scalar_prefetch = 0 : i64, scratch_operands = 1 : i64, tpu.core_type = #tpu.core_type<tc>, window_params = [{transform_indices = @transform_0, window_bounds = array<i64: 8, 256>}, {pipeline_mode = #tpu.pipeline_mode<synchronous>, transform_indices = @transform_1, window_bounds = array<i64: 2, 8>}, {pipeline_mode = #tpu.pipeline_mode<synchronous>, transform_indices = @transform_2, window_bounds = array<i64: 8, 32>}, {pipeline_mode = #tpu.pipeline_mode<synchronous>, transform_indices = @transform_3, window_bounds = array<i64: 1, 32>}, {pipeline_mode = #tpu.pipeline_mode<synchronous>, transform_indices = @transform_4, window_bounds = array<i64: 32, 128>}, {pipeline_mode = #tpu.pipeline_mode<synchronous>, transform_indices = @transform_5, window_bounds = array<i64: 1, 128>}, {transform_indices = @transform_6, window_bounds = array<i64: 2, 128>}]} {
    %c0_i32 = arith.constant 0 : i32
    %0 = arith.cmpi eq, %arg1, %c0_i32 : i32
    %1 = arith.extui %0 : i1 to i32
    %c0_i32_0 = arith.constant 0 : i32
    %2 = arith.cmpi ne, %1, %c0_i32_0 : i32
    scf.if %2 {
      %cst_8 = arith.constant 0.000000e+00 : f32
      %12 = vector.broadcast %cst_8 : f32 to vector<8x1xf32>
      %c0_9 = arith.constant 0 : index
      %c0_10 = arith.constant 0 : index
      %13 = vector.load %arg9[%c0_9, %c0_10] : memref<8x1xf32, #tpu.memory_space<vmem>>, vector<8x1xf32>
      tpu.vector_store %arg9[%c0_9, %c0_10], %12 {strides = array<i32>} : memref<8x1xf32, #tpu.memory_space<vmem>>, vector<8x1xf32>,
    } else {
    }
    %c0 = arith.constant 0 : index
    %c0_1 = arith.constant 0 : index
    %3 = vector.load %arg9[%c0, %c0_1] : memref<8x1xf32, #tpu.memory_space<vmem>>, vector<8x1xf32>
    %c0_2 = arith.constant 0 : index
    %c0_3 = arith.constant 0 : index
    %4 = vector.load %arg2[%c0_2, %c0_3] : memref<8x256xf32, #tpu.memory_space<vmem>>, vector<8x256xf32>
    %cst = arith.constant dense<0.000000e+00> : vector<8xf32>
    %5 = vector.multi_reduction <add>, %4, %cst [1] : vector<8x256xf32> to vector<8xf32>
    %6 = vector.shape_cast %5 : vector<8xf32> to vector<8x1xf32>
    %7 = arith.addf %3, %6 : vector<8x1xf32>
    %c0_4 = arith.constant 0 : index
    %c0_5 = arith.constant 0 : index
    %8 = vector.load %arg9[%c0_4, %c0_5] : memref<8x1xf32, #tpu.memory_space<vmem>>, vector<8x1xf32>
    tpu.vector_store %arg9[%c0_4, %c0_5], %7 {strides = array<i32>} : memref<8x1xf32, #tpu.memory_space<vmem>>, vector<8x1xf32>,
    %c0_i32_6 = arith.constant 0 : i32
    %9 = arith.cmpi eq, %arg1, %c0_i32_6 : i32
    %10 = arith.extui %9 : i1 to i32
    %c0_i32_7 = arith.constant 0 : i32
    %11 = arith.cmpi ne, %10, %c0_i32_7 : i32
    scf.if %11 {
      %c0_8 = arith.constant 0 : index
      %c0_9 = arith.constant 0 : index
      %12 = vector.load %arg9[%c0_8, %c0_9] : memref<8x1xf32, #tpu.memory_space<vmem>>, vector<8x1xf32>
      %cst_10 = arith.constant 3.906250e-03 : f32
      %13 = vector.broadcast %cst_10 : f32 to vector<8x1xf32>
      %14 = arith.mulf %12, %13 : vector<8x1xf32>
      %c0_11 = arith.constant 0 : index
      %c0_12 = arith.constant 0 : index
      %15 = vector.load %arg4[%c0_11, %c0_12] : memref<8x32xf32, #tpu.memory_space<vmem>>, vector<8x32xf32>
      %16 = vector.broadcast %14 : vector<8x1xf32> to vector<8x32xf32>
      %17 = arith.mulf %16, %15 : vector<8x32xf32>
      %c0_13 = arith.constant 0 : index
      %c0_14 = arith.constant 0 : index
      %18 = vector.load %arg3[%c0_13, %c0_14] : memref<2x8xf32, #tpu.memory_space<vmem>>, vector<2x8xf32>
      %cst_15 = arith.constant dense<0.000000e+00> : vector<2x32xf32>
      %19 = tpu.matmul %18, %17, %cst_15 {dimension_numbers = #tpu.dot_dimension_numbers<[1], [0], [0], [1], [0, 0, 1, 1], [], []>} : vector<2x8xf32>, vector<8x32xf32>, vector<2x32xf32> -> vector<2x32xf32>
      %c0_16 = arith.constant 0 : index
      %c0_17 = arith.constant 0 : index
      %20 = vector.load %arg5[%c0_16, %c0_17] : memref<1x32xf32, #tpu.memory_space<vmem>>, vector<1x32xf32>
      %21 = vector.broadcast %20 : vector<1x32xf32> to vector<2x32xf32>
      %22 = arith.addf %19, %21 : vector<2x32xf32>
      %c0_18 = arith.constant 0 : index
      %c0_19 = arith.constant 0 : index
      %23 = vector.load %arg6[%c0_18, %c0_19] : memref<32x128xf32, #tpu.memory_space<vmem>>, vector<32x128xf32>
      %cst_20 = arith.constant dense<0.000000e+00> : vector<2x128xf32>
      %24 = tpu.matmul %22, %23, %cst_20 {dimension_numbers = #tpu.dot_dimension_numbers<[1], [0], [0], [1], [0, 0, 1, 1], [], []>} : vector<2x32xf32>, vector<32x128xf32>, vector<2x128xf32> -> vector<2x128xf32>
      %c0_21 = arith.constant 0 : index
      %c0_22 = arith.constant 0 : index
      %25 = vector.load %arg7[%c0_21, %c0_22] : memref<1x128xf32, #tpu.memory_space<vmem>>, vector<1x128xf32>
      %26 = vector.broadcast %25 : vector<1x128xf32> to vector<2x128xf32>
      %27 = arith.addf %24, %26 : vector<2x128xf32>
      %c0_23 = arith.constant 0 : index
      %c0_24 = arith.constant 0 : index
      %28 = vector.load %arg8[%c0_23, %c0_24] : memref<2x128xf32, #tpu.memory_space<vmem>>, vector<2x128xf32>
      tpu.vector_store %arg8[%c0_23, %c0_24], %27 {strides = array<i32>} : memref<2x128xf32, #tpu.memory_space<vmem>>, vector<2x128xf32>,
    } else {
    }
    return
  }
  func.func @transform_0(%arg0: i32, %arg1: i32) -> (i32, i32) {
    %c0_i32 = arith.constant 0 : i32
    return %arg0, %arg1 : i32, i32
  }
  func.func @transform_1(%arg0: i32, %arg1: i32) -> (i32, i32) {
    %c0_i32 = arith.constant 0 : i32
    %c0_i32_0 = arith.constant 0 : i32
    %c0_i32_1 = arith.constant 0 : i32
    return %c0_i32, %c0_i32_0 : i32, i32
  }
  func.func @transform_2(%arg0: i32, %arg1: i32) -> (i32, i32) {
    %c0_i32 = arith.constant 0 : i32
    %c0_i32_0 = arith.constant 0 : i32
    %c0_i32_1 = arith.constant 0 : i32
    return %c0_i32, %c0_i32_0 : i32, i32
  }
  func.func @transform_3(%arg0: i32, %arg1: i32) -> (i32, i32) {
    %c0_i32 = arith.constant 0 : i32
    %c0_i32_0 = arith.constant 0 : i32
    %c0_i32_1 = arith.constant 0 : i32
    return %c0_i32, %c0_i32_0 : i32, i32
  }
  func.func @transform_4(%arg0: i32, %arg1: i32) -> (i32, i32) {
    %c0_i32 = arith.constant 0 : i32
    %c0_i32_0 = arith.constant 0 : i32
    %c0_i32_1 = arith.constant 0 : i32
    return %c0_i32, %c0_i32_0 : i32, i32
  }
  func.func @transform_5(%arg0: i32, %arg1: i32) -> (i32, i32) {
    %c0_i32 = arith.constant 0 : i32
    %c0_i32_0 = arith.constant 0 : i32
    %c0_i32_1 = arith.constant 0 : i32
    return %c0_i32, %c0_i32_0 : i32, i32
  }
  func.func @transform_6(%arg0: i32, %arg1: i32) -> (i32, i32) {
    %c0_i32 = arith.constant 0 : i32
    %c0_i32_0 = arith.constant 0 : i32
    return %arg0, %c0_i32 : i32, i32
  }
}

</mosaic_0001>

<llo_original>
// kernel: tpu_custom_call.1
$region0: #{tpu_custom_call.1}
  #allocation0 [shape = 'u32[]', space=smem, size = 0x4, offset = 0x4, fixed_abs, tag = 'smem constant byte address 0x4 - core index']
  #allocation1 [shape = 'u32[144,128]{1,0:T(1,128)}', space=vmem, size = 0x12000, scoped, tag = 'internal scratch']
  #allocation2 [shape = 'f32[8,1]{1,0:T(8,128)}', space=vmem, size = 0x1000, scoped, tag = 'scratch operand']
  %s0 = inlined_call_operand.hbm [shape: f32[8,256], index: 0, kind: input, shape index: {}]
  %s1 = inlined_call_operand.hbm [shape: f32[2,8], index: 1, kind: input, shape index: {}]
  %s2 = inlined_call_operand.hbm [shape: f32[8,32], index: 2, kind: input, shape index: {}]
  %s3 = inlined_call_operand.vmem [shape: f32[1,32], index: 3, kind: input, shape index: {}]
  %s4 = inlined_call_operand.hbm [shape: f32[32,128], index: 4, kind: input, shape index: {}]
  %s5 = inlined_call_operand.vmem [shape: f32[1,128], index: 5, kind: input, shape index: {}]
  %s6 = inlined_call_operand.hbm [shape: f32[2,128], index: 6, kind: output, shape index: {}]
  %s7 = sld [smem:[#allocation0]]
  $region58: #{tpu_custom_call.1} parent=0
    _
  %s9 = ssub.s32 1, %s7
  %s10 = scalar_select 0, %s9, %s7
  $region1: #{tpu_custom_call.1} parent=0
    #allocation3 [shape = 'u8[8192]{0}', space=vmem, size = 0x2000, scoped, tag = 'input window, operand 0, single buffered']
    #allocation4 [shape = 's32[1]{0}', space=sflag, size = 0x4, scoped, tag = 'scoped memory for tpu_custom_call.1']
    #allocation5 [shape = 's32[1]{0}', space=sflag, size = 0x4, scoped, tag = 'scoped memory for tpu_custom_call.1']
    #allocation6 [shape = 'u8[1024]{0}', space=vmem, size = 0x400, scoped, tag = 'input window, operand 1, single buffered']
    #allocation7 [shape = 's32[1]{0}', space=sflag, size = 0x4, scoped, tag = 'scoped memory for tpu_custom_call.1']
    #allocation8 [shape = 'u8[4096]{0}', space=vmem, size = 0x1000, scoped, tag = 'input window, operand 2, single buffered']
    #allocation9 [shape = 'u8[16384]{0}', space=vmem, size = 0x4000, scoped, tag = 'input window, operand 4, single buffered']
    #allocation10 [shape = 's32[1]{0}', space=sflag, size = 0x4, scoped, tag = 'scoped memory for tpu_custom_call.1']
    #allocation11 [shape = 'u8[1024]{0}', space=vmem, size = 0x400, scoped, tag = 'output window, operand 0, single buffered']
    %11 = vsyncpa [#allocation4], 0
    %12 = vsyncpa [#allocation7], 0
    %13 = vsyncpa [#allocation10], 0
    %14 = vsyncpa [#allocation5], 0
    // Predicated region
    $region2: #{tpu_custom_call.1} parent=1 // pred_check
      _
    $region3: #{tpu_custom_call.1} parent=1 // pred_check_branch
      %16 = sbr.rel (0) target = $region5
    $region4: #{tpu_custom_call.1} parent=1 // pred_region
      %s18 = ssub.s32 256, 256
      %19 = vsyncadd [#allocation4], %s18
      %s21 = sshll.u32 [#allocation3], 4
      %s22 = int_to_ptr.vmem [resolvable:$true] %s21
      %24 = dma.hbm_to_vmem [thread:$0]  %s0, 256, %s22, [#allocation4]
    $region5: #{tpu_custom_call.1} parent=1 // pred_fallthru
      _
    // Predicated region
    $region6: #{tpu_custom_call.1} parent=1 // pred_check
      _
    $region7: #{tpu_custom_call.1} parent=1 // pred_check_branch
      %26 = sbr.rel (0) target = $region9
    $region8: #{tpu_custom_call.1} parent=1 // pred_region
      %s28 = ssub.s32 32, 32
      %29 = vsyncadd [#allocation7], %s28
      %s31 = sshll.u32 [#allocation6], 4
      %s32 = int_to_ptr.vmem [resolvable:$true] %s31
      %34 = dma.hbm_to_vmem [thread:$0]  %s1, 32, %s32, [#allocation7]
    $region9: #{tpu_custom_call.1} parent=1 // pred_fallthru
      _
    // Predicated region
    $region10: #{tpu_custom_call.1} parent=1 // pred_check
      _
    $region11: #{tpu_custom_call.1} parent=1 // pred_check_branch
      %36 = sbr.rel (0) target = $region13
    $region12: #{tpu_custom_call.1} parent=1 // pred_region
      %s38 = ssub.s32 128, 128
      %39 = vsyncadd [#allocation7], %s38
      %s41 = sshll.u32 [#allocation8], 4
      %s42 = int_to_ptr.vmem [resolvable:$true] %s41
      %44 = dma.hbm_to_vmem [thread:$0]  %s2, 128, %s42, [#allocation7]
    $region13: #{tpu_custom_call.1} parent=1 // pred_fallthru
      _
    // Predicated region
    $region14: #{tpu_custom_call.1} parent=1 // pred_check
      _
    $region15: #{tpu_custom_call.1} parent=1 // pred_check_branch
      %46 = sbr.rel (0) target = $region17
    $region16: #{tpu_custom_call.1} parent=1 // pred_region
      _
    $region17: #{tpu_custom_call.1} parent=1 // pred_fallthru
      _
    // Predicated region
    $region18: #{tpu_custom_call.1} parent=1 // pred_check
      _
    $region19: #{tpu_custom_call.1} parent=1 // pred_check_branch
      %48 = sbr.rel (0) target = $region21
    $region20: #{tpu_custom_call.1} parent=1 // pred_region
      %s50 = ssub.s32 512, 512
      %51 = vsyncadd [#allocation10], %s50
      %s52 = sshll.u32 [#allocation9], 4
      %s53 = int_to_ptr.vmem [resolvable:$true] %s52
      %58 = dma.hbm_to_vmem [thread:$0]  %s4, 512, %s53, [#allocation10], 128, 128, 8
    $region21: #{tpu_custom_call.1} parent=1 // pred_fallthru
      _
    // Predicated region
    $region22: #{tpu_custom_call.1} parent=1 // pred_check
      _
    $region23: #{tpu_custom_call.1} parent=1 // pred_check_branch
      %60 = sbr.rel (0) target = $region25
    $region24: #{tpu_custom_call.1} parent=1 // pred_region
      _
    $region25: #{tpu_custom_call.1} parent=1 // pred_fallthru
      _
    // Predicated region
    $region26: #{tpu_custom_call.1} parent=1 // pred_check
      _
    $region27: #{tpu_custom_call.1} parent=1 // pred_check_branch
      %62 = sbr.rel (0) target = $region29
    $region28: #{tpu_custom_call.1} parent=1 // pred_region
      %63 = dma.done [#allocation4], 256
    $region29: #{tpu_custom_call.1} parent=1 // pred_fallthru
      _
    // Predicated region
    $region30: #{tpu_custom_call.1} parent=1 // pred_check
      _
    $region31: #{tpu_custom_call.1} parent=1 // pred_check_branch
      %65 = sbr.rel (0) target = $region33
    $region32: #{tpu_custom_call.1} parent=1 // pred_region
      %66 = dma.done [#allocation7], 32
    $region33: #{tpu_custom_call.1} parent=1 // pred_fallthru
      _
    // Predicated region
    $region34: #{tpu_custom_call.1} parent=1 // pred_check
      _
    $region35: #{tpu_custom_call.1} parent=1 // pred_check_branch
      %68 = sbr.rel (0) target = $region37
    $region36: #{tpu_custom_call.1} parent=1 // pred_region
      %69 = dma.done [#allocation7], 128
    $region37: #{tpu_custom_call.1} parent=1 // pred_fallthru
      _
    // Predicated region
    $region38: #{tpu_custom_call.1} parent=1 // pred_check
      _
    $region39: #{tpu_custom_call.1} parent=1 // pred_check_branch
      %71 = sbr.rel (0) target = $region41
    $region40: #{tpu_custom_call.1} parent=1 // pred_region
      %72 = dma.done [#allocation10], 512
    $region41: #{tpu_custom_call.1} parent=1 // pred_fallthru
      _
    %p73 = scmp.eq.s32.totalorder 0, 0
    // Predicated region
    $region42: #{tpu_custom_call.1} parent=1 // pred_check
      %p74 = pneg %p73
    $region43: #{tpu_custom_call.1} parent=1 // pred_check_branch
      %76 = sbr.rel (%p74) target = $region45
    $region44: #{tpu_custom_call.1} parent=1 // pred_region
      %vm77 = vcmask 7168
      %78 = vst.msk [vmem:[#allocation2] sm:$0xff] %vm77, 0.0
    $region45: #{tpu_custom_call.1} parent=1 // pred_fallthru
      _
    %v79 = vld [vmem:[#allocation2] sm:$0xff]
    %v80 = vld [vmem:[#allocation3] sm:$0xff]
    %v81 = vld [vmem:[#allocation3 + $0x8] sm:$0xff]
    %v82 = vadd.f32 %v80, %v81
    %83 = vadd.xlane.f32.xlu0 %v82
    %v84 = vpop.xlane.xlu0 %83
    %v85 = vadd.f32 %v79, %v84
    %vm86 = vcmask 7168
    %87 = vst.msk [vmem:[#allocation2] sm:$0xff] %vm86, %v85
    // Predicated region
    $region46: #{tpu_custom_call.1} parent=1 // pred_check
      %p88 = pneg %p73
    $region47: #{tpu_custom_call.1} parent=1 // pred_check_branch
      %90 = sbr.rel (%p88) target = $region49
    $region48: #{tpu_custom_call.1} parent=1 // pred_region
      %v91 = vld [vmem:[#allocation2] sm:$0xff]
      %v92 = vmul.f32 %v91, 0.00390625
      %v93 = vld [vmem:[#allocation8] sm:$0xff]
      %95 = vset.pattern.permute.xlu0 0
      %96 = vperm.xlu0 %95, %v92
      %v97 = vpop.permute.xlu0 %96
      %v99 = vmul.f32 %v97, %v93
      %v100 = vld [vmem:[#allocation6] sm:$0x3]
      %v101 = vld [vmem:[%s3] sm:$0x1]
      %v103 = vlaneseq
      %v104 = vshrl.u32 %v103, 7
      %v105 = vsub.s32 0, %v104
      %v106 = vrot.slane %v101, %v105
      %vm108 = vcmask 64512
      %v110 = vsel %vm108, %v100, 0
      %112 = vmatprep.subr.mxu0 0.0
      %113 = vmatpush1.msra.mxu0 0.0
      %114 = vmatprep.subr.mxu0 0.0
      %115 = vmatpush1.msra.mxu0 0.0
      %116 = vmatprep.subr.mxu0 0.0
      %117 = vmatpush1.msra.mxu0 0.0
      %118 = vmatprep.subr.mxu0 0.0
      %119 = vmatpush1.msra.mxu0 0.0
      %120 = vmatprep.subr.mxu0 0.0
      %121 = vmatpush1.msra.mxu0 0.0
      %122 = vmatprep.subr.mxu0 0.0
      %123 = vmatpush1.msra.mxu0 0.0
      %124 = vmatprep.subr.mxu0 0.0
      %125 = vmatpush1.msra.mxu0 0.0
      %126 = vmatprep.subr.mxu0 0.0
      %127 = vmatpush1.msra.mxu0 0.0
      %128 = vmatprep.subr.mxu0 0.0
      %129 = vmatpush1.msra.mxu0 0.0
      %130 = vmatprep.subr.mxu0 0.0
      %131 = vmatpush1.msra.mxu0 0.0
      %132 = vmatprep.subr.mxu0 0.0
      %133 = vmatpush1.msra.mxu0 0.0
      %134 = vmatprep.subr.mxu0 0.0
      %135 = vmatpush1.msra.mxu0 0.0
      %136 = vmatprep.subr.mxu0 0.0
      %137 = vmatpush1.msra.mxu0 0.0
      %138 = vmatprep.subr.mxu0 0.0
      %139 = vmatpush1.msra.mxu0 0.0
      %140 = vmatprep.subr.mxu0 0.0
      %141 = vmatpush1.msra.mxu0 0.0
      %142 = vmatprep.subr.mxu0 0.0
      %143 = vmatpush1.msra.mxu0 %v99
      %144 = vmatprep.subr.mxu0 0.0
      %145 = vmatpush2.msra.mxu0 0.0
      %146 = vmatprep.subr.mxu0 0.0
      %147 = vmatpush2.msra.mxu0 0.0
      %148 = vmatprep.subr.mxu0 0.0
      %149 = vmatpush2.msra.mxu0 0.0
      %150 = vmatprep.subr.mxu0 0.0
      %151 = vmatpush2.msra.mxu0 0.0
      %152 = vmatprep.subr.mxu0 0.0
      %153 = vmatpush2.msra.mxu0 0.0
      %154 = vmatprep.subr.mxu0 0.0
      %155 = vmatpush2.msra.mxu0 0.0
      %156 = vmatprep.subr.mxu0 0.0
      %157 = vmatpush2.msra.mxu0 0.0
      %158 = vmatprep.subr.mxu0 0.0
      %159 = vmatpush2.msra.mxu0 0.0
      %160 = vmatprep.subr.mxu0 0.0
      %161 = vmatpush2.msra.mxu0 0.0
      %162 = vmatprep.subr.mxu0 0.0
      %163 = vmatpush2.msra.mxu0 0.0
      %164 = vmatprep.subr.mxu0 0.0
      %165 = vmatpush2.msra.mxu0 0.0
      %166 = vmatprep.subr.mxu0 0.0
      %167 = vmatpush2.msra.mxu0 0.0
      %168 = vmatprep.subr.mxu0 0.0
      %169 = vmatpush2.msra.mxu0 0.0
      %170 = vmatprep.subr.mxu0 0.0
      %171 = vmatpush2.msra.mxu0 0.0
      %172 = vmatprep.subr.mxu0 0.0
      %173 = vmatpush2.msra.mxu0 0.0
      %174 = vmatprep.subr.mxu0 0.0
      %175 = vmatpush2.msra.mxu0 0.0
      %176 = vmatprep.mubr.f32.mxu0 0.0
      %177 = vmatmul.mubr.f32.gmra.mxu0 %v110
      %v178 = vpop.f32.mrf.mxu0
      %v179 = vadd.f32 %v106, %v178
      %v180 = vpop.f32.mrf.mxu0
      %181 = vdwg.mxu0
      %v182 = vld [vmem:[#allocation9] sm:$0xff]
      %v183 = vld [vmem:[#allocation9 + $0x8] sm:$0xff]
      %v184 = vld [vmem:[#allocation9 + $0x10] sm:$0xff]
      %v185 = vld [vmem:[#allocation9 + $0x18] sm:$0xff]
      %v186 = vld [vmem:[%s5] sm:$0x1]
      %v188 = vlaneseq
      %v189 = vshrl.u32 %v188, 7
      %v190 = vsub.s32 0, %v189
      %v191 = vrot.slane %v186, %v190
      %vm193 = vcmask 261120
      %v195 = vsel %vm193, %v179, 0
      %197 = vmatprep.subr.mxu0 0.0
      %198 = vmatpush1.msra.mxu0 0.0
      %199 = vmatprep.subr.mxu0 0.0
      %200 = vmatpush1.msra.mxu0 0.0
      %201 = vmatprep.subr.mxu0 0.0
      %202 = vmatpush1.msra.mxu0 0.0
      %203 = vmatprep.subr.mxu0 0.0
      %204 = vmatpush1.msra.mxu0 0.0
      %205 = vmatprep.subr.mxu0 0.0
      %206 = vmatpush1.msra.mxu0 0.0
      %207 = vmatprep.subr.mxu0 0.0
      %208 = vmatpush1.msra.mxu0 0.0
      %209 = vmatprep.subr.mxu0 0.0
      %210 = vmatpush1.msra.mxu0 0.0
      %211 = vmatprep.subr.mxu0 0.0
      %212 = vmatpush1.msra.mxu0 0.0
      %213 = vmatprep.subr.mxu0 0.0
      %214 = vmatpush1.msra.mxu0 0.0
      %215 = vmatprep.subr.mxu0 0.0
      %216 = vmatpush1.msra.mxu0 0.0
      %217 = vmatprep.subr.mxu0 0.0
      %218 = vmatpush1.msra.mxu0 0.0
      %219 = vmatprep.subr.mxu0 0.0
      %220 = vmatpush1.msra.mxu0 0.0
      %221 = vmatprep.subr.mxu0 0.0
      %222 = vmatpush1.msra.mxu0 %v185
      %223 = vmatprep.subr.mxu0 0.0
      %224 = vmatpush1.msra.mxu0 %v184
      %225 = vmatprep.subr.mxu0 0.0
      %226 = vmatpush1.msra.mxu0 %v183
      %227 = vmatprep.subr.mxu0 0.0
      %228 = vmatpush1.msra.mxu0 %v182
      %229 = vmatprep.subr.mxu0 0.0
      %230 = vmatpush2.msra.mxu0 0.0
      %231 = vmatprep.subr.mxu0 0.0
      %232 = vmatpush2.msra.mxu0 0.0
      %233 = vmatprep.subr.mxu0 0.0
      %234 = vmatpush2.msra.mxu0 0.0
      %235 = vmatprep.subr.mxu0 0.0
      %236 = vmatpush2.msra.mxu0 0.0
      %237 = vmatprep.subr.mxu0 0.0
      %238 = vmatpush2.msra.mxu0 0.0
      %239 = vmatprep.subr.mxu0 0.0
      %240 = vmatpush2.msra.mxu0 0.0
      %241 = vmatprep.subr.mxu0 0.0
      %242 = vmatpush2.msra.mxu0 0.0
      %243 = vmatprep.subr.mxu0 0.0
      %244 = vmatpush2.msra.mxu0 0.0
      %245 = vmatprep.subr.mxu0 0.0
      %246 = vmatpush2.msra.mxu0 0.0
      %247 = vmatprep.subr.mxu0 0.0
      %248 = vmatpush2.msra.mxu0 0.0
      %249 = vmatprep.subr.mxu0 0.0
      %250 = vmatpush2.msra.mxu0 0.0
      %251 = vmatprep.subr.mxu0 0.0
      %252 = vmatpush2.msra.mxu0 0.0
      %253 = vmatprep.subr.mxu0 0.0
      %254 = vmatpush2.msra.mxu0 0.0
      %255 = vmatprep.subr.mxu0 0.0
      %256 = vmatpush2.msra.mxu0 0.0
      %257 = vmatprep.subr.mxu0 0.0
      %258 = vmatpush2.msra.mxu0 0.0
      %259 = vmatprep.subr.mxu0 0.0
      %260 = vmatpush2.msra.mxu0 0.0
      %261 = vmatprep.mubr.f32.mxu0 0.0
      %262 = vmatmul.mubr.f32.gmra.mxu0 %v195
      %v263 = vpop.f32.mrf.mxu0
      %v264 = vadd.f32 %v191, %v263
      %v265 = vpop.f32.mrf.mxu0
      %266 = vdwg.mxu0
      %267 = vst [vmem:[#allocation11] sm:$0x3] %v264
    $region49: #{tpu_custom_call.1} parent=1 // pred_fallthru
      _
    // Predicated region
    $region50: #{tpu_custom_call.1} parent=1 // pred_check
      _
    $region51: #{tpu_custom_call.1} parent=1 // pred_check_branch
      %269 = sbr.rel (0) target = $region53
    $region52: #{tpu_custom_call.1} parent=1 // pred_region
      %s271 = ssub.s32 32, 32
      %272 = vsyncadd [#allocation5], %s271
      %s274 = sshll.u32 [#allocation11], 4
      %s275 = int_to_ptr.vmem [resolvable:$true] %s274
      %277 = dma.vmem_to_hbm [thread:$0]  %s275, 32, %s6, [#allocation5]
    $region53: #{tpu_custom_call.1} parent=1 // pred_fallthru
      _
    // Predicated region
    $region54: #{tpu_custom_call.1} parent=1 // pred_check
      _
    $region55: #{tpu_custom_call.1} parent=1 // pred_check_branch
      %279 = sbr.rel (0) target = $region57
    $region56: #{tpu_custom_call.1} parent=1 // pred_region
      %280 = dma.done [#allocation5], 32
    $region57: #{tpu_custom_call.1} parent=1 // pred_fallthru
      _
    %281 = vsyncpa [#allocation4], 1
    %282 = vsyncpa [#allocation7], 1
    %283 = vsyncpa [#allocation10], 1
    %284 = vsyncpa [#allocation5], 1

</llo_original>
